<compile_context>
chip_gen: v7x
topology: tpu7x:2x2x1
jax: 0.10.0
libtpu: 0.0.40
codegen_flags: <defaults>
</compile_context>

<pallas_src>
import functools

import jax
import jax.numpy as jnp
import numpy as np
from jax import lax
from jax.experimental import pallas as pl
from jax.experimental.pallas import tpu as pltpu

# TODO(synk): the "transformer" branch (pretrained MOMENT-1-large pipeline +
# PEFT LoRA + classification head) requires a foreign pretrained model and has
# no clean Pallas equivalent; only the "lstm" branch forward is implemented.


def _lstm_kernel(gx_ref, whh_ref, h0_ref, c0_ref,
                 out_ref, hn_ref, cn_ref, h_scr, c_scr):
    """One grid step == one time CHUNK. Recurrence runs in an unrolled fori_loop.

    gx_ref : (t_chunk, bsz, 4H)  precomputed x-projection + bias (f32)
    whh_ref: (H, 4H)             recurrent weight, matmul dtype (f32 or bf16)
    h0/c0  : (bsz, H)            initial state (f32)
    out_ref: (t_chunk, bsz, H)   per-step hidden states
    hn/cn  : (bsz, H)            final state (written on last chunk only)
    h_scr/c_scr : VMEM (bsz, H) f32 carry across chunks
    """
    chunk = pl.program_id(0)
    n_chunks = pl.num_programs(0)
    t_chunk, bsz, hid = out_ref.shape

    @pl.when(chunk == 0)
    def _():
        h_scr[...] = h0_ref[...].astype(jnp.float32)
        c_scr[...] = c0_ref[...].astype(jnp.float32)

    # Hoisted loop invariants (loaded / built once per chunk).
    whh = whh_ref[...]                                        # (H, 4H)
    lane = lax.broadcasted_iota(jnp.int32, (bsz, 4 * hid), 1)
    g_mask = (lane >= 2 * hid) & (lane < 3 * hid)             # lanes of the "g" gate

    def step(t, carry):
        h, c = carry                                          # (bsz, H) f32 each
        gates = gx_ref[t] + jnp.dot(h.astype(whh.dtype), whh,
                                    preferred_element_type=jnp.float32)
        # Whole-vreg activations + lane-mask select (PyTorch order i|f|g|o).
        act = jnp.where(g_mask, jnp.tanh(gates), jax.nn.sigmoid(gates))
        i_g = act[:, 0 * hid:1 * hid]
        f_g = act[:, 1 * hid:2 * hid]
        g_g = act[:, 2 * hid:3 * hid]
        o_g = act[:, 3 * hid:4 * hid]

        c_new = f_g * c + i_g * g_g
        h_new = o_g * jnp.tanh(c_new)

        out_ref[t] = h_new.astype(out_ref.dtype)
        return (h_new, c_new)

    h_fin, c_fin = lax.fori_loop(0, t_chunk, step,
                                 (h_scr[...], c_scr[...]), unroll=True)

    # Persist the carry for the next chunk (once per chunk, not per step).
    h_scr[...] = h_fin
    c_scr[...] = c_fin

    # Final state written once, on the last chunk only.
    @pl.when(chunk == n_chunks - 1)
    def _():
        hn_ref[...] = h_fin.astype(hn_ref.dtype)
        cn_ref[...] = c_fin.astype(cn_ref.dtype)


@functools.partial(jax.jit, static_argnames=("t_chunk", "matmul_dtype"))
def lstm_layer_pallas(x_bf, w_ih, w_hh, b_ih, b_hh, h0, c0,
                      t_chunk=None, matmul_dtype=jnp.float32):
    """Single-layer LSTM forward.

    x_bf : (bsz, seq, in_dim)   batch-first input
    w_ih : (4H, in_dim), w_hh : (4H, H), b_ih/b_hh : (4H,)
    h0, c0 : (bsz, H)
    matmul_dtype: operand dtype for the MXU matmuls (f32, or bf16 on v6e/v7x);
                  accumulation + elementwise math always stay f32.
    returns (out (bsz, seq, H), h_n (bsz, H), c_n (bsz, H))
    """
    bsz, seq, in_dim = x_bf.shape
    hid = h0.shape[-1]
    if t_chunk is None or seq % t_chunk != 0:
        t_chunk = seq
    n_chunks = seq // t_chunk
    md = matmul_dtype

    # --- Hoisted input projection: one big matmul for all time steps. ---
    wih_t = jnp.transpose(w_ih).astype(md)                    # (in_dim, 4H)
    whh_t = jnp.transpose(w_hh).astype(md)                    # (H, 4H)
    bias = (b_ih + b_hh).astype(jnp.float32)                  # (4H,)

    x_tm = jnp.transpose(x_bf, (1, 0, 2))                     # (seq, bsz, in_dim)
    gx = jnp.dot(x_tm.reshape(seq * bsz, in_dim).astype(md), wih_t,
                 preferred_element_type=jnp.float32) + bias
    gx = gx.reshape(seq, bsz, 4 * hid)                        # (seq, bsz, 4H) f32

    out, h_n, c_n = pl.pallas_call(
        _lstm_kernel,
        out_shape=(
            jax.ShapeDtypeStruct((seq, bsz, hid), jnp.float32),
            jax.ShapeDtypeStruct((bsz, hid), jnp.float32),
            jax.ShapeDtypeStruct((bsz, hid), jnp.float32),
        ),
        grid_spec=pltpu.PrefetchScalarGridSpec(
            num_scalar_prefetch=0,
            grid=(n_chunks,),
            in_specs=[
                pl.BlockSpec((t_chunk, bsz, 4 * hid), lambda c: (c, 0, 0)),  # gx chunk
                pl.BlockSpec((hid, 4 * hid), lambda c: (0, 0)),              # W_hh^T
                pl.BlockSpec((bsz, hid), lambda c: (0, 0)),                  # h0
                pl.BlockSpec((bsz, hid), lambda c: (0, 0)),                  # c0
            ],
            out_specs=[
                pl.BlockSpec((t_chunk, bsz, hid), lambda c: (c, 0, 0)),      # out chunk
                pl.BlockSpec((bsz, hid), lambda c: (0, 0)),                  # h_n
                pl.BlockSpec((bsz, hid), lambda c: (0, 0)),                  # c_n
            ],
            scratch_shapes=[
                pltpu.VMEM((bsz, hid), jnp.float32),   # h carry across chunks
                pltpu.VMEM((bsz, hid), jnp.float32),   # c carry across chunks
            ],
        ),
        # Time-chunk axis is a sequential recurrence -> must stay "arbitrary".
        compiler_params=pltpu.CompilerParams(
            dimension_semantics=("arbitrary",)),
    )(gx, whh_t, h0.astype(jnp.float32), c0.astype(jnp.float32))

    return jnp.transpose(out, (1, 0, 2)), h_n, c_n


def deep_stopping_model_forward(x, hc, params, matmul_dtype=jnp.float32):
    """Mirrors DeepStoppingModel.forward for model_type='lstm' (n_layers=1)."""
    h0, c0 = hc                                      # (n_layers, bsz, H) each
    out, h_n, c_n = lstm_layer_pallas(
        x, params["w_ih"], params["w_hh"], params["b_ih"], params["b_hh"],
        h0[0], c0[0], t_chunk=None, matmul_dtype=matmul_dtype)
    return out, (h_n[None, ...], c_n[None, ...])


def _lstm_reference(x_bf, w_ih, w_hh, b_ih, b_hh, h0, c0,
                    matmul_dtype=jnp.float32):
    """Pure-JAX reference (lax.scan), same matmul-operand dtype policy."""
    hid = h0.shape[-1]
    md = matmul_dtype
    wih_t = jnp.transpose(w_ih).astype(md)
    whh_t = jnp.transpose(w_hh).astype(md)
    bias = (b_ih + b_hh).astype(jnp.float32)

    def step(carry, x_t):
        h, c = carry
        gates = (jnp.dot(x_t.astype(md), wih_t, preferred_element_type=jnp.float32)
                 + jnp.dot(h.astype(md), whh_t, preferred_element_type=jnp.float32)
                 + bias)
        i_g = jax.nn.sigmoid(gates[:, 0 * hid:1 * hid])
        f_g = jax.nn.sigmoid(gates[:, 1 * hid:2 * hid])
        g_g = jnp.tanh(gates[:, 2 * hid:3 * hid])
        o_g = jax.nn.sigmoid(gates[:, 3 * hid:4 * hid])
        c_new = f_g * c + i_g * g_g
        h_new = o_g * jnp.tanh(c_new)
        return (h_new, c_new), h_new

    (h_n, c_n), outs = lax.scan(step, (h0, c0), jnp.transpose(x_bf, (1, 0, 2)))
    return jnp.transpose(outs, (1, 0, 2)), h_n, c_n


if __name__ == "__main__":
    # Small shapes implied by the module defaults: bsz, seq, in_dim, hid_dim.
    bsz, seq, in_dim, hid_dim, n_layers = 2, 8, 4, 32, 1

    key = jax.random.PRNGKey(0)
    k_x, k_wih, k_whh, k_bih, k_bhh, k_h, k_c = jax.random.split(key, 7)

    # Deterministic parameter init, PyTorch-style U(-1/sqrt(H), 1/sqrt(H)).
    bound = 1.0 / np.sqrt(hid_dim)
    params = {
        "w_ih": jax.random.uniform(k_wih, (4 * hid_dim, in_dim), jnp.float32,
                                   -bound, bound),
        "w_hh": jax.random.uniform(k_whh, (4 * hid_dim, hid_dim), jnp.float32,
                                   -bound, bound),
        "b_ih": jax.random.uniform(k_bih, (4 * hid_dim,), jnp.float32,
                                   -bound, bound),
        "b_hh": jax.random.uniform(k_bhh, (4 * hid_dim,), jnp.float32,
                                   -bound, bound),
    }

    x = jax.random.normal(k_x, (bsz, seq, in_dim), jnp.float32)
    # DeepStoppingModel.init(): hc = (randn(n_layers,bsz,H), randn(n_layers,bsz,H))
    h0 = jax.random.normal(k_h, (n_layers, bsz, hid_dim), jnp.float32)
    c0 = jax.random.normal(k_c, (n_layers, bsz, hid_dim), jnp.float32)

    # --- f32 MXU operands (default; tight tolerance) ---
    out, (h_n, c_n) = deep_stopping_model_forward(x, (h0, c0), params)
    out = jax.block_until_ready(out)
    h_n = jax.block_until_ready(h_n)
    c_n = jax.block_until_ready(c_n)

    ref_out, ref_h, ref_c = _lstm_reference(
        x, params["w_ih"], params["w_hh"], params["b_ih"], params["b_hh"],
        h0[0], c0[0])
    np.testing.assert_allclose(np.asarray(out), np.asarray(ref_out),
                               rtol=1e-5, atol=1e-5)
    np.testing.assert_allclose(np.asarray(h_n[0]), np.asarray(ref_h),
                               rtol=1e-5, atol=1e-5)
    np.testing.assert_allclose(np.asarray(c_n[0]), np.asarray(ref_c),
                               rtol=1e-5, atol=1e-5)

    # --- bf16 MXU operands (v6e/v7x recommendation), f32 accumulation ---
    out_bf, (hn_bf, cn_bf) = deep_stopping_model_forward(
        x, (h0, c0), params, matmul_dtype=jnp.bfloat16)
    out_bf = jax.block_until_ready(out_bf)
    ref_out_bf, ref_h_bf, ref_c_bf = _lstm_reference(
        x, params["w_ih"], params["w_hh"], params["b_ih"], params["b_hh"],
        h0[0], c0[0], matmul_dtype=jnp.bfloat16)
    np.testing.assert_allclose(np.asarray(out_bf), np.asarray(ref_out_bf),
                               rtol=1e-2, atol=1e-2)
    np.testing.assert_allclose(np.asarray(hn_bf[0]), np.asarray(ref_h_bf),
                               rtol=1e-2, atol=1e-2)
    np.testing.assert_allclose(np.asarray(cn_bf[0]), np.asarray(ref_c_bf),
                               rtol=1e-2, atol=1e-2)

    print("KERNEL_OK")
</pallas_src>

<mosaic_0001>
module attributes {stable_mosaic.version = 11 : i64} {
  func.func @_lstm_kernel(%arg0: i32, %arg1: memref<8x2x128xf32, #tpu.memory_space<vmem>>, %arg2: memref<32x128xf32, #tpu.memory_space<vmem>>, %arg3: memref<2x32xf32, #tpu.memory_space<vmem>>, %arg4: memref<2x32xf32, #tpu.memory_space<vmem>>, %arg5: memref<8x2x32xf32, #tpu.memory_space<vmem>>, %arg6: memref<2x32xf32, #tpu.memory_space<vmem>>, %arg7: memref<2x32xf32, #tpu.memory_space<vmem>>, %arg8: memref<2x32xf32, #tpu.memory_space<vmem>>, %arg9: memref<2x32xf32, #tpu.memory_space<vmem>>) attributes {dimension_semantics = [#tpu.dimension_semantics<arbitrary>], iteration_bounds = array<i64: 1>, scalar_prefetch = 0 : i64, scratch_operands = 2 : i64, tpu.core_type = #tpu.core_type<tc>, window_params = [{transform_indices = @transform_0, window_bounds = array<i64: 8, 2, 128>}, {pipeline_mode = #tpu.pipeline_mode<synchronous>, transform_indices = @transform_1, window_bounds = array<i64: 32, 128>}, {pipeline_mode = #tpu.pipeline_mode<synchronous>, transform_indices = @transform_2, window_bounds = array<i64: 2, 32>}, {pipeline_mode = #tpu.pipeline_mode<synchronous>, transform_indices = @transform_3, window_bounds = array<i64: 2, 32>}, {transform_indices = @transform_4, window_bounds = array<i64: 8, 2, 32>}, {pipeline_mode = #tpu.pipeline_mode<synchronous>, transform_indices = @transform_5, window_bounds = array<i64: 2, 32>}, {pipeline_mode = #tpu.pipeline_mode<synchronous>, transform_indices = @transform_6, window_bounds = array<i64: 2, 32>}]} {
    %c0_i32 = arith.constant 0 : i32
    %0 = arith.cmpi eq, %arg0, %c0_i32 : i32
    %1 = arith.extui %0 : i1 to i32
    %c0_i32_0 = arith.constant 0 : i32
    %2 = arith.cmpi ne, %1, %c0_i32_0 : i32
    scf.if %2 {
      %c0_60 = arith.constant 0 : index
      %c0_61 = arith.constant 0 : index
      %217 = vector.load %arg3[%c0_60, %c0_61] : memref<2x32xf32, #tpu.memory_space<vmem>>, vector<2x32xf32>
      %c0_62 = arith.constant 0 : index
      %c0_63 = arith.constant 0 : index
      %218 = vector.load %arg8[%c0_62, %c0_63] : memref<2x32xf32, #tpu.memory_space<vmem>>, vector<2x32xf32>
      tpu.vector_store %arg8[%c0_62, %c0_63], %217 {strides = array<i32>} : memref<2x32xf32, #tpu.memory_space<vmem>>, vector<2x32xf32>,
      %c0_64 = arith.constant 0 : index
      %c0_65 = arith.constant 0 : index
      %219 = vector.load %arg4[%c0_64, %c0_65] : memref<2x32xf32, #tpu.memory_space<vmem>>, vector<2x32xf32>
      %c0_66 = arith.constant 0 : index
      %c0_67 = arith.constant 0 : index
      %220 = vector.load %arg9[%c0_66, %c0_67] : memref<2x32xf32, #tpu.memory_space<vmem>>, vector<2x32xf32>
      tpu.vector_store %arg9[%c0_66, %c0_67], %219 {strides = array<i32>} : memref<2x32xf32, #tpu.memory_space<vmem>>, vector<2x32xf32>,
    } else {
    }
    %c0 = arith.constant 0 : index
    %c0_1 = arith.constant 0 : index
    %3 = vector.load %arg2[%c0, %c0_1] : memref<32x128xf32, #tpu.memory_space<vmem>>, vector<32x128xf32>
    %4 = tpu.iota {dimensions = array<i32: 1>} : vector<2x128xi32>
    %c64_i32 = arith.constant 64 : i32
    %5 = vector.broadcast %c64_i32 : i32 to vector<2x128xi32>
    %6 = arith.cmpi sge, %4, %5 : vector<2x128xi32>
    %c96_i32 = arith.constant 96 : i32
    %7 = vector.broadcast %c96_i32 : i32 to vector<2x128xi32>
    %8 = arith.cmpi slt, %4, %7 : vector<2x128xi32>
    %9 = arith.andi %6, %8 : vector<2x128xi1>
    %c0_2 = arith.constant 0 : index
    %c0_3 = arith.constant 0 : index
    %10 = vector.load %arg8[%c0_2, %c0_3] : memref<2x32xf32, #tpu.memory_space<vmem>>, vector<2x32xf32>
    %c0_4 = arith.constant 0 : index
    %c0_5 = arith.constant 0 : index
    %11 = vector.load %arg9[%c0_4, %c0_5] : memref<2x32xf32, #tpu.memory_space<vmem>>, vector<2x32xf32>
    %c0_i32_6 = arith.constant 0 : i32
    %12 = arith.index_cast %c0_i32_6 : i32 to index
    %c0_7 = arith.constant 0 : index
    %c0_8 = arith.constant 0 : index
    %13 = vector.load %arg1[%12, %c0_7, %c0_8] : memref<8x2x128xf32, #tpu.memory_space<vmem>>, vector<1x2x128xf32>
    %14 = vector.shape_cast %13 : vector<1x2x128xf32> to vector<2x128xf32>
    %cst = arith.constant dense<0.000000e+00> : vector<2x128xf32>
    %15 = tpu.matmul %10, %3, %cst {dimension_numbers = #tpu.dot_dimension_numbers<[1], [0], [0], [1], [0, 0, 1, 1], [], []>} : vector<2x32xf32>, vector<32x128xf32>, vector<2x128xf32> -> vector<2x128xf32>
    %16 = arith.addf %14, %15 : vector<2x128xf32>
    %17 = math.tanh %16 : vector<2x128xf32>
    %18 = arith.negf %16 : vector<2x128xf32>
    %19 = math.exp %18 : vector<2x128xf32>
    %cst_9 = arith.constant 1.000000e+00 : f32
    %20 = vector.broadcast %cst_9 : f32 to vector<2x128xf32>
    %21 = arith.addf %20, %19 : vector<2x128xf32>
    %22 = arith.divf %20, %21 : vector<2x128xf32>
    %23 = arith.select %9, %17, %22 : vector<2x128xi1>, vector<2x128xf32>
    %24 = vector.extract_strided_slice %23 {offsets = [0, 0], sizes = [2, 32], strides = [1, 1]} : vector<2x128xf32> to vector<2x32xf32>
    %25 = vector.extract_strided_slice %23 {offsets = [0, 32], sizes = [2, 32], strides = [1, 1]} : vector<2x128xf32> to vector<2x32xf32>
    %26 = vector.extract_strided_slice %23 {offsets = [0, 64], sizes = [2, 32], strides = [1, 1]} : vector<2x128xf32> to vector<2x32xf32>
    %27 = vector.extract_strided_slice %23 {offsets = [0, 96], sizes = [2, 32], strides = [1, 1]} : vector<2x128xf32> to vector<2x32xf32>
    %28 = arith.mulf %25, %11 : vector<2x32xf32>
    %29 = arith.mulf %24, %26 : vector<2x32xf32>
    %30 = arith.addf %28, %29 : vector<2x32xf32>
    %31 = math.tanh %30 : vector<2x32xf32>
    %32 = arith.mulf %27, %31 : vector<2x32xf32>
    %33 = arith.index_cast %c0_i32_6 : i32 to index
    %c0_10 = arith.constant 0 : index
    %c0_11 = arith.constant 0 : index
    %34 = vector.load %arg5[%33, %c0_10, %c0_11] : memref<8x2x32xf32, #tpu.memory_space<vmem>>, vector<1x2x32xf32>
    %35 = vector.shape_cast %34 : vector<1x2x32xf32> to vector<2x32xf32>
    %36 = vector.shape_cast %32 : vector<2x32xf32> to vector<1x2x32xf32>
    tpu.vector_store %arg5[%33, %c0_10, %c0_11], %36 {strides = array<i32>} : memref<8x2x32xf32, #tpu.memory_space<vmem>>, vector<1x2x32xf32>,
    %c1_i32 = arith.constant 1 : i32
    %37 = arith.index_cast %c1_i32 : i32 to index
    %c0_12 = arith.constant 0 : index
    %c0_13 = arith.constant 0 : index
    %38 = vector.load %arg1[%37, %c0_12, %c0_13] : memref<8x2x128xf32, #tpu.memory_space<vmem>>, vector<1x2x128xf32>
    %39 = vector.shape_cast %38 : vector<1x2x128xf32> to vector<2x128xf32>
    %cst_14 = arith.constant dense<0.000000e+00> : vector<2x128xf32>
    %40 = tpu.matmul %32, %3, %cst_14 {dimension_numbers = #tpu.dot_dimension_numbers<[1], [0], [0], [1], [0, 0, 1, 1], [], []>} : vector<2x32xf32>, vector<32x128xf32>, vector<2x128xf32> -> vector<2x128xf32>
    %41 = arith.addf %39, %40 : vector<2x128xf32>
    %42 = math.tanh %41 : vector<2x128xf32>
    %43 = arith.negf %41 : vector<2x128xf32>
    %44 = math.exp %43 : vector<2x128xf32>
    %cst_15 = arith.constant 1.000000e+00 : f32
    %45 = vector.broadcast %cst_15 : f32 to vector<2x128xf32>
    %46 = arith.addf %45, %44 : vector<2x128xf32>
    %47 = arith.divf %45, %46 : vector<2x128xf32>
    %48 = arith.select %9, %42, %47 : vector<2x128xi1>, vector<2x128xf32>
    %49 = vector.extract_strided_slice %48 {offsets = [0, 0], sizes = [2, 32], strides = [1, 1]} : vector<2x128xf32> to vector<2x32xf32>
    %50 = vector.extract_strided_slice %48 {offsets = [0, 32], sizes = [2, 32], strides = [1, 1]} : vector<2x128xf32> to vector<2x32xf32>
    %51 = vector.extract_strided_slice %48 {offsets = [0, 64], sizes = [2, 32], strides = [1, 1]} : vector<2x128xf32> to vector<2x32xf32>
    %52 = vector.extract_strided_slice %48 {offsets = [0, 96], sizes = [2, 32], strides = [1, 1]} : vector<2x128xf32> to vector<2x32xf32>
    %53 = arith.mulf %50, %30 : vector<2x32xf32>
    %54 = arith.mulf %49, %51 : vector<2x32xf32>
    %55 = arith.addf %53, %54 : vector<2x32xf32>
    %56 = math.tanh %55 : vector<2x32xf32>
    %57 = arith.mulf %52, %56 : vector<2x32xf32>
    %58 = arith.index_cast %c1_i32 : i32 to index
    %c0_16 = arith.constant 0 : index
    %c0_17 = arith.constant 0 : index
    %59 = vector.load %arg5[%58, %c0_16, %c0_17] : memref<8x2x32xf32, #tpu.memory_space<vmem>>, vector<1x2x32xf32>
    %60 = vector.shape_cast %59 : vector<1x2x32xf32> to vector<2x32xf32>
    %61 = vector.shape_cast %57 : vector<2x32xf32> to vector<1x2x32xf32>
    tpu.vector_store %arg5[%58, %c0_16, %c0_17], %61 {strides = array<i32>} : memref<8x2x32xf32, #tpu.memory_space<vmem>>, vector<1x2x32xf32>,
    %c2_i32 = arith.constant 2 : i32
    %62 = arith.index_cast %c2_i32 : i32 to index
    %c0_18 = arith.constant 0 : index
    %c0_19 = arith.constant 0 : index
    %63 = vector.load %arg1[%62, %c0_18, %c0_19] : memref<8x2x128xf32, #tpu.memory_space<vmem>>, vector<1x2x128xf32>
    %64 = vector.shape_cast %63 : vector<1x2x128xf32> to vector<2x128xf32>
    %cst_20 = arith.constant dense<0.000000e+00> : vector<2x128xf32>
    %65 = tpu.matmul %57, %3, %cst_20 {dimension_numbers = #tpu.dot_dimension_numbers<[1], [0], [0], [1], [0, 0, 1, 1], [], []>} : vector<2x32xf32>, vector<32x128xf32>, vector<2x128xf32> -> vector<2x128xf32>
    %66 = arith.addf %64, %65 : vector<2x128xf32>
    %67 = math.tanh %66 : vector<2x128xf32>
    %68 = arith.negf %66 : vector<2x128xf32>
    %69 = math.exp %68 : vector<2x128xf32>
    %cst_21 = arith.constant 1.000000e+00 : f32
    %70 = vector.broadcast %cst_21 : f32 to vector<2x128xf32>
    %71 = arith.addf %70, %69 : vector<2x128xf32>
    %72 = arith.divf %70, %71 : vector<2x128xf32>
    %73 = arith.select %9, %67, %72 : vector<2x128xi1>, vector<2x128xf32>
    %74 = vector.extract_strided_slice %73 {offsets = [0, 0], sizes = [2, 32], strides = [1, 1]} : vector<2x128xf32> to vector<2x32xf32>
    %75 = vector.extract_strided_slice %73 {offsets = [0, 32], sizes = [2, 32], strides = [1, 1]} : vector<2x128xf32> to vector<2x32xf32>
    %76 = vector.extract_strided_slice %73 {offsets = [0, 64], sizes = [2, 32], strides = [1, 1]} : vector<2x128xf32> to vector<2x32xf32>
    %77 = vector.extract_strided_slice %73 {offsets = [0, 96], sizes = [2, 32], strides = [1, 1]} : vector<2x128xf32> to vector<2x32xf32>
    %78 = arith.mulf %75, %55 : vector<2x32xf32>
    %79 = arith.mulf %74, %76 : vector<2x32xf32>
    %80 = arith.addf %78, %79 : vector<2x32xf32>
    %81 = math.tanh %80 : vector<2x32xf32>
    %82 = arith.mulf %77, %81 : vector<2x32xf32>
    %83 = arith.index_cast %c2_i32 : i32 to index
    %c0_22 = arith.constant 0 : index
    %c0_23 = arith.constant 0 : index
    %84 = vector.load %arg5[%83, %c0_22, %c0_23] : memref<8x2x32xf32, #tpu.memory_space<vmem>>, vector<1x2x32xf32>
    %85 = vector.shape_cast %84 : vector<1x2x32xf32> to vector<2x32xf32>
    %86 = vector.shape_cast %82 : vector<2x32xf32> to vector<1x2x32xf32>
    tpu.vector_store %arg5[%83, %c0_22, %c0_23], %86 {strides = array<i32>} : memref<8x2x32xf32, #tpu.memory_space<vmem>>, vector<1x2x32xf32>,
    %c3_i32 = arith.constant 3 : i32
    %87 = arith.index_cast %c3_i32 : i32 to index
    %c0_24 = arith.constant 0 : index
    %c0_25 = arith.constant 0 : index
    %88 = vector.load %arg1[%87, %c0_24, %c0_25] : memref<8x2x128xf32, #tpu.memory_space<vmem>>, vector<1x2x128xf32>
    %89 = vector.shape_cast %88 : vector<1x2x128xf32> to vector<2x128xf32>
    %cst_26 = arith.constant dense<0.000000e+00> : vector<2x128xf32>
    %90 = tpu.matmul %82, %3, %cst_26 {dimension_numbers = #tpu.dot_dimension_numbers<[1], [0], [0], [1], [0, 0, 1, 1], [], []>} : vector<2x32xf32>, vector<32x128xf32>, vector<2x128xf32> -> vector<2x128xf32>
    %91 = arith.addf %89, %90 : vector<2x128xf32>
    %92 = math.tanh %91 : vector<2x128xf32>
    %93 = arith.negf %91 : vector<2x128xf32>
    %94 = math.exp %93 : vector<2x128xf32>
    %cst_27 = arith.constant 1.000000e+00 : f32
    %95 = vector.broadcast %cst_27 : f32 to vector<2x128xf32>
    %96 = arith.addf %95, %94 : vector<2x128xf32>
    %97 = arith.divf %95, %96 : vector<2x128xf32>
    %98 = arith.select %9, %92, %97 : vector<2x128xi1>, vector<2x128xf32>
    %99 = vector.extract_strided_slice %98 {offsets = [0, 0], sizes = [2, 32], strides = [1, 1]} : vector<2x128xf32> to vector<2x32xf32>
    %100 = vector.extract_strided_slice %98 {offsets = [0, 32], sizes = [2, 32], strides = [1, 1]} : vector<2x128xf32> to vector<2x32xf32>
    %101 = vector.extract_strided_slice %98 {offsets = [0, 64], sizes = [2, 32], strides = [1, 1]} : vector<2x128xf32> to vector<2x32xf32>
    %102 = vector.extract_strided_slice %98 {offsets = [0, 96], sizes = [2, 32], strides = [1, 1]} : vector<2x128xf32> to vector<2x32xf32>
    %103 = arith.mulf %100, %80 : vector<2x32xf32>
    %104 = arith.mulf %99, %101 : vector<2x32xf32>
    %105 = arith.addf %103, %104 : vector<2x32xf32>
    %106 = math.tanh %105 : vector<2x32xf32>
    %107 = arith.mulf %102, %106 : vector<2x32xf32>
    %108 = arith.index_cast %c3_i32 : i32 to index
    %c0_28 = arith.constant 0 : index
    %c0_29 = arith.constant 0 : index
    %109 = vector.load %arg5[%108, %c0_28, %c0_29] : memref<8x2x32xf32, #tpu.memory_space<vmem>>, vector<1x2x32xf32>
    %110 = vector.shape_cast %109 : vector<1x2x32xf32> to vector<2x32xf32>
    %111 = vector.shape_cast %107 : vector<2x32xf32> to vector<1x2x32xf32>
    tpu.vector_store %arg5[%108, %c0_28, %c0_29], %111 {strides = array<i32>} : memref<8x2x32xf32, #tpu.memory_space<vmem>>, vector<1x2x32xf32>,
    %c4_i32 = arith.constant 4 : i32
    %112 = arith.index_cast %c4_i32 : i32 to index
    %c0_30 = arith.constant 0 : index
    %c0_31 = arith.constant 0 : index
    %113 = vector.load %arg1[%112, %c0_30, %c0_31] : memref<8x2x128xf32, #tpu.memory_space<vmem>>, vector<1x2x128xf32>
    %114 = vector.shape_cast %113 : vector<1x2x128xf32> to vector<2x128xf32>
    %cst_32 = arith.constant dense<0.000000e+00> : vector<2x128xf32>
    %115 = tpu.matmul %107, %3, %cst_32 {dimension_numbers = #tpu.dot_dimension_numbers<[1], [0], [0], [1], [0, 0, 1, 1], [], []>} : vector<2x32xf32>, vector<32x128xf32>, vector<2x128xf32> -> vector<2x128xf32>
    %116 = arith.addf %114, %115 : vector<2x128xf32>
    %117 = math.tanh %116 : vector<2x128xf32>
    %118 = arith.negf %116 : vector<2x128xf32>
    %119 = math.exp %118 : vector<2x128xf32>
    %cst_33 = arith.constant 1.000000e+00 : f32
    %120 = vector.broadcast %cst_33 : f32 to vector<2x128xf32>
    %121 = arith.addf %120, %119 : vector<2x128xf32>
    %122 = arith.divf %120, %121 : vector<2x128xf32>
    %123 = arith.select %9, %117, %122 : vector<2x128xi1>, vector<2x128xf32>
    %124 = vector.extract_strided_slice %123 {offsets = [0, 0], sizes = [2, 32], strides = [1, 1]} : vector<2x128xf32> to vector<2x32xf32>
    %125 = vector.extract_strided_slice %123 {offsets = [0, 32], sizes = [2, 32], strides = [1, 1]} : vector<2x128xf32> to vector<2x32xf32>
    %126 = vector.extract_strided_slice %123 {offsets = [0, 64], sizes = [2, 32], strides = [1, 1]} : vector<2x128xf32> to vector<2x32xf32>
    %127 = vector.extract_strided_slice %123 {offsets = [0, 96], sizes = [2, 32], strides = [1, 1]} : vector<2x128xf32> to vector<2x32xf32>
    %128 = arith.mulf %125, %105 : vector<2x32xf32>
    %129 = arith.mulf %124, %126 : vector<2x32xf32>
    %130 = arith.addf %128, %129 : vector<2x32xf32>
    %131 = math.tanh %130 : vector<2x32xf32>
    %132 = arith.mulf %127, %131 : vector<2x32xf32>
    %133 = arith.index_cast %c4_i32 : i32 to index
    %c0_34 = arith.constant 0 : index
    %c0_35 = arith.constant 0 : index
    %134 = vector.load %arg5[%133, %c0_34, %c0_35] : memref<8x2x32xf32, #tpu.memory_space<vmem>>, vector<1x2x32xf32>
    %135 = vector.shape_cast %134 : vector<1x2x32xf32> to vector<2x32xf32>
    %136 = vector.shape_cast %132 : vector<2x32xf32> to vector<1x2x32xf32>
    tpu.vector_store %arg5[%133, %c0_34, %c0_35], %136 {strides = array<i32>} : memref<8x2x32xf32, #tpu.memory_space<vmem>>, vector<1x2x32xf32>,
    %c5_i32 = arith.constant 5 : i32
    %137 = arith.index_cast %c5_i32 : i32 to index
    %c0_36 = arith.constant 0 : index
    %c0_37 = arith.constant 0 : index
    %138 = vector.load %arg1[%137, %c0_36, %c0_37] : memref<8x2x128xf32, #tpu.memory_space<vmem>>, vector<1x2x128xf32>
    %139 = vector.shape_cast %138 : vector<1x2x128xf32> to vector<2x128xf32>
    %cst_38 = arith.constant dense<0.000000e+00> : vector<2x128xf32>
    %140 = tpu.matmul %132, %3, %cst_38 {dimension_numbers = #tpu.dot_dimension_numbers<[1], [0], [0], [1], [0, 0, 1, 1], [], []>} : vector<2x32xf32>, vector<32x128xf32>, vector<2x128xf32> -> vector<2x128xf32>
    %141 = arith.addf %139, %140 : vector<2x128xf32>
    %142 = math.tanh %141 : vector<2x128xf32>
    %143 = arith.negf %141 : vector<2x128xf32>
    %144 = math.exp %143 : vector<2x128xf32>
    %cst_39 = arith.constant 1.000000e+00 : f32
    %145 = vector.broadcast %cst_39 : f32 to vector<2x128xf32>
    %146 = arith.addf %145, %144 : vector<2x128xf32>
    %147 = arith.divf %145, %146 : vector<2x128xf32>
    %148 = arith.select %9, %142, %147 : vector<2x128xi1>, vector<2x128xf32>
    %149 = vector.extract_strided_slice %148 {offsets = [0, 0], sizes = [2, 32], strides = [1, 1]} : vector<2x128xf32> to vector<2x32xf32>
    %150 = vector.extract_strided_slice %148 {offsets = [0, 32], sizes = [2, 32], strides = [1, 1]} : vector<2x128xf32> to vector<2x32xf32>
    %151 = vector.extract_strided_slice %148 {offsets = [0, 64], sizes = [2, 32], strides = [1, 1]} : vector<2x128xf32> to vector<2x32xf32>
    %152 = vector.extract_strided_slice %148 {offsets = [0, 96], sizes = [2, 32], strides = [1, 1]} : vector<2x128xf32> to vector<2x32xf32>
    %153 = arith.mulf %150, %130 : vector<2x32xf32>
    %154 = arith.mulf %149, %151 : vector<2x32xf32>
    %155 = arith.addf %153, %154 : vector<2x32xf32>
    %156 = math.tanh %155 : vector<2x32xf32>
    %157 = arith.mulf %152, %156 : vector<2x32xf32>
    %158 = arith.index_cast %c5_i32 : i32 to index
    %c0_40 = arith.constant 0 : index
    %c0_41 = arith.constant 0 : index
    %159 = vector.load %arg5[%158, %c0_40, %c0_41] : memref<8x2x32xf32, #tpu.memory_space<vmem>>, vector<1x2x32xf32>
    %160 = vector.shape_cast %159 : vector<1x2x32xf32> to vector<2x32xf32>
    %161 = vector.shape_cast %157 : vector<2x32xf32> to vector<1x2x32xf32>
    tpu.vector_store %arg5[%158, %c0_40, %c0_41], %161 {strides = array<i32>} : memref<8x2x32xf32, #tpu.memory_space<vmem>>, vector<1x2x32xf32>,
    %c6_i32 = arith.constant 6 : i32
    %162 = arith.index_cast %c6_i32 : i32 to index
    %c0_42 = arith.constant 0 : index
    %c0_43 = arith.constant 0 : index
    %163 = vector.load %arg1[%162, %c0_42, %c0_43] : memref<8x2x128xf32, #tpu.memory_space<vmem>>, vector<1x2x128xf32>
    %164 = vector.shape_cast %163 : vector<1x2x128xf32> to vector<2x128xf32>
    %cst_44 = arith.constant dense<0.000000e+00> : vector<2x128xf32>
    %165 = tpu.matmul %157, %3, %cst_44 {dimension_numbers = #tpu.dot_dimension_numbers<[1], [0], [0], [1], [0, 0, 1, 1], [], []>} : vector<2x32xf32>, vector<32x128xf32>, vector<2x128xf32> -> vector<2x128xf32>
    %166 = arith.addf %164, %165 : vector<2x128xf32>
    %167 = math.tanh %166 : vector<2x128xf32>
    %168 = arith.negf %166 : vector<2x128xf32>
    %169 = math.exp %168 : vector<2x128xf32>
    %cst_45 = arith.constant 1.000000e+00 : f32
    %170 = vector.broadcast %cst_45 : f32 to vector<2x128xf32>
    %171 = arith.addf %170, %169 : vector<2x128xf32>
    %172 = arith.divf %170, %171 : vector<2x128xf32>
    %173 = arith.select %9, %167, %172 : vector<2x128xi1>, vector<2x128xf32>
    %174 = vector.extract_strided_slice %173 {offsets = [0, 0], sizes = [2, 32], strides = [1, 1]} : vector<2x128xf32> to vector<2x32xf32>
    %175 = vector.extract_strided_slice %173 {offsets = [0, 32], sizes = [2, 32], strides = [1, 1]} : vector<2x128xf32> to vector<2x32xf32>
    %176 = vector.extract_strided_slice %173 {offsets = [0, 64], sizes = [2, 32], strides = [1, 1]} : vector<2x128xf32> to vector<2x32xf32>
    %177 = vector.extract_strided_slice %173 {offsets = [0, 96], sizes = [2, 32], strides = [1, 1]} : vector<2x128xf32> to vector<2x32xf32>
    %178 = arith.mulf %175, %155 : vector<2x32xf32>
    %179 = arith.mulf %174, %176 : vector<2x32xf32>
    %180 = arith.addf %178, %179 : vector<2x32xf32>
    %181 = math.tanh %180 : vector<2x32xf32>
    %182 = arith.mulf %177, %181 : vector<2x32xf32>
    %183 = arith.index_cast %c6_i32 : i32 to index
    %c0_46 = arith.constant 0 : index
    %c0_47 = arith.constant 0 : index
    %184 = vector.load %arg5[%183, %c0_46, %c0_47] : memref<8x2x32xf32, #tpu.memory_space<vmem>>, vector<1x2x32xf32>
    %185 = vector.shape_cast %184 : vector<1x2x32xf32> to vector<2x32xf32>
    %186 = vector.shape_cast %182 : vector<2x32xf32> to vector<1x2x32xf32>
    tpu.vector_store %arg5[%183, %c0_46, %c0_47], %186 {strides = array<i32>} : memref<8x2x32xf32, #tpu.memory_space<vmem>>, vector<1x2x32xf32>,
    %c7_i32 = arith.constant 7 : i32
    %187 = arith.index_cast %c7_i32 : i32 to index
    %c0_48 = arith.constant 0 : index
    %c0_49 = arith.constant 0 : index
    %188 = vector.load %arg1[%187, %c0_48, %c0_49] : memref<8x2x128xf32, #tpu.memory_space<vmem>>, vector<1x2x128xf32>
    %189 = vector.shape_cast %188 : vector<1x2x128xf32> to vector<2x128xf32>
    %cst_50 = arith.constant dense<0.000000e+00> : vector<2x128xf32>
    %190 = tpu.matmul %182, %3, %cst_50 {dimension_numbers = #tpu.dot_dimension_numbers<[1], [0], [0], [1], [0, 0, 1, 1], [], []>} : vector<2x32xf32>, vector<32x128xf32>, vector<2x128xf32> -> vector<2x128xf32>
    %191 = arith.addf %189, %190 : vector<2x128xf32>
    %192 = math.tanh %191 : vector<2x128xf32>
    %193 = arith.negf %191 : vector<2x128xf32>
    %194 = math.exp %193 : vector<2x128xf32>
    %cst_51 = arith.constant 1.000000e+00 : f32
    %195 = vector.broadcast %cst_51 : f32 to vector<2x128xf32>
    %196 = arith.addf %195, %194 : vector<2x128xf32>
    %197 = arith.divf %195, %196 : vector<2x128xf32>
    %198 = arith.select %9, %192, %197 : vector<2x128xi1>, vector<2x128xf32>
    %199 = vector.extract_strided_slice %198 {offsets = [0, 0], sizes = [2, 32], strides = [1, 1]} : vector<2x128xf32> to vector<2x32xf32>
    %200 = vector.extract_strided_slice %198 {offsets = [0, 32], sizes = [2, 32], strides = [1, 1]} : vector<2x128xf32> to vector<2x32xf32>
    %201 = vector.extract_strided_slice %198 {offsets = [0, 64], sizes = [2, 32], strides = [1, 1]} : vector<2x128xf32> to vector<2x32xf32>
    %202 = vector.extract_strided_slice %198 {offsets = [0, 96], sizes = [2, 32], strides = [1, 1]} : vector<2x128xf32> to vector<2x32xf32>
    %203 = arith.mulf %200, %180 : vector<2x32xf32>
    %204 = arith.mulf %199, %201 : vector<2x32xf32>
    %205 = arith.addf %203, %204 : vector<2x32xf32>
    %206 = math.tanh %205 : vector<2x32xf32>
    %207 = arith.mulf %202, %206 : vector<2x32xf32>
    %208 = arith.index_cast %c7_i32 : i32 to index
    %c0_52 = arith.constant 0 : index
    %c0_53 = arith.constant 0 : index
    %209 = vector.load %arg5[%208, %c0_52, %c0_53] : memref<8x2x32xf32, #tpu.memory_space<vmem>>, vector<1x2x32xf32>
    %210 = vector.shape_cast %209 : vector<1x2x32xf32> to vector<2x32xf32>
    %211 = vector.shape_cast %207 : vector<2x32xf32> to vector<1x2x32xf32>
    tpu.vector_store %arg5[%208, %c0_52, %c0_53], %211 {strides = array<i32>} : memref<8x2x32xf32, #tpu.memory_space<vmem>>, vector<1x2x32xf32>,
    %c8_i32 = arith.constant 8 : i32
    %c0_54 = arith.constant 0 : index
    %c0_55 = arith.constant 0 : index
    %212 = vector.load %arg8[%c0_54, %c0_55] : memref<2x32xf32, #tpu.memory_space<vmem>>, vector<2x32xf32>
    tpu.vector_store %arg8[%c0_54, %c0_55], %207 {strides = array<i32>} : memref<2x32xf32, #tpu.memory_space<vmem>>, vector<2x32xf32>,
    %c0_56 = arith.constant 0 : index
    %c0_57 = arith.constant 0 : index
    %213 = vector.load %arg9[%c0_56, %c0_57] : memref<2x32xf32, #tpu.memory_space<vmem>>, vector<2x32xf32>
    tpu.vector_store %arg9[%c0_56, %c0_57], %205 {strides = array<i32>} : memref<2x32xf32, #tpu.memory_space<vmem>>, vector<2x32xf32>,
    %c0_i32_58 = arith.constant 0 : i32
    %214 = arith.cmpi eq, %arg0, %c0_i32_58 : i32
    %215 = arith.extui %214 : i1 to i32
    %c0_i32_59 = arith.constant 0 : i32
    %216 = arith.cmpi ne, %215, %c0_i32_59 : i32
    scf.if %216 {
      %c0_60 = arith.constant 0 : index
      %c0_61 = arith.constant 0 : index
      %217 = vector.load %arg6[%c0_60, %c0_61] : memref<2x32xf32, #tpu.memory_space<vmem>>, vector<2x32xf32>
      tpu.vector_store %arg6[%c0_60, %c0_61], %207 {strides = array<i32>} : memref<2x32xf32, #tpu.memory_space<vmem>>, vector<2x32xf32>,
      %c0_62 = arith.constant 0 : index
      %c0_63 = arith.constant 0 : index
      %218 = vector.load %arg7[%c0_62, %c0_63] : memref<2x32xf32, #tpu.memory_space<vmem>>, vector<2x32xf32>
      tpu.vector_store %arg7[%c0_62, %c0_63], %205 {strides = array<i32>} : memref<2x32xf32, #tpu.memory_space<vmem>>, vector<2x32xf32>,
    } else {
    }
    return
  }
  func.func @transform_0(%arg0: i32) -> (i32, i32, i32) {
    %c0_i32 = arith.constant 0 : i32
    %c0_i32_0 = arith.constant 0 : i32
    %c0_i32_1 = arith.constant 0 : i32
    return %arg0, %c0_i32, %c0_i32_0 : i32, i32, i32
  }
  func.func @transform_1(%arg0: i32) -> (i32, i32) {
    %c0_i32 = arith.constant 0 : i32
    %c0_i32_0 = arith.constant 0 : i32
    %c0_i32_1 = arith.constant 0 : i32
    return %c0_i32, %c0_i32_0 : i32, i32
  }
  func.func @transform_2(%arg0: i32) -> (i32, i32) {
    %c0_i32 = arith.constant 0 : i32
    %c0_i32_0 = arith.constant 0 : i32
    %c0_i32_1 = arith.constant 0 : i32
    return %c0_i32, %c0_i32_0 : i32, i32
  }
  func.func @transform_3(%arg0: i32) -> (i32, i32) {
    %c0_i32 = arith.constant 0 : i32
    %c0_i32_0 = arith.constant 0 : i32
    %c0_i32_1 = arith.constant 0 : i32
    return %c0_i32, %c0_i32_0 : i32, i32
  }
  func.func @transform_4(%arg0: i32) -> (i32, i32, i32) {
    %c0_i32 = arith.constant 0 : i32
    %c0_i32_0 = arith.constant 0 : i32
    %c0_i32_1 = arith.constant 0 : i32
    return %arg0, %c0_i32, %c0_i32_0 : i32, i32, i32
  }
  func.func @transform_5(%arg0: i32) -> (i32, i32) {
    %c0_i32 = arith.constant 0 : i32
    %c0_i32_0 = arith.constant 0 : i32
    %c0_i32_1 = arith.constant 0 : i32
    return %c0_i32, %c0_i32_0 : i32, i32
  }
  func.func @transform_6(%arg0: i32) -> (i32, i32) {
    %c0_i32 = arith.constant 0 : i32
    %c0_i32_0 = arith.constant 0 : i32
    %c0_i32_1 = arith.constant 0 : i32
    return %c0_i32, %c0_i32_0 : i32, i32
  }
}

</mosaic_0001>

<llo_original>
// kernel: lstm_layer_pallas.1
$region0: #{lstm_layer_pallas.1}
  #allocation0 [shape = 'u32[]', space=smem, size = 0x4, offset = 0x4, fixed_abs, tag = 'smem constant byte address 0x4 - core index']
  #allocation1 [shape = 'u32[144,128]{1,0:T(1,128)}', space=vmem, size = 0x12000, scoped, tag = 'internal scratch']
  #allocation2 [shape = 'f32[2,32]{1,0:T(2,128)}', space=vmem, size = 0x400, scoped, tag = 'scratch operand']
  #allocation3 [shape = 'f32[2,32]{1,0:T(2,128)}', space=vmem, size = 0x400, scoped, tag = 'scratch operand']
  %s0 = inlined_call_operand.vmem [shape: f32[8,2,128], index: 0, kind: input, shape index: {}]
  %s1 = inlined_call_operand.vmem [shape: f32[32,128], index: 1, kind: input, shape index: {}]
  %s2 = inlined_call_operand.vmem [shape: f32[2,32], index: 2, kind: input, shape index: {}]
  %s3 = inlined_call_operand.vmem [shape: f32[2,32], index: 3, kind: input, shape index: {}]
  %s4 = inlined_call_operand.vmem [shape: f32[8,2,32], index: 4, kind: output, shape index: {0}]
  %s5 = inlined_call_operand.hbm [shape: f32[2,32], index: 5, kind: output, shape index: {1}]
  %s6 = inlined_call_operand.hbm [shape: f32[2,32], index: 6, kind: output, shape index: {2}]
  %7 = xla_tuple %s4, %s5, %s6
  %s8 = sld [smem:[#allocation0]]
  $region50: #{lstm_layer_pallas.1} parent=0
    _
  %s10 = ssub.s32 1, %s8
  %s11 = scalar_select 0, %s10, %s8
  $region1: #{lstm_layer_pallas.1} parent=0
    #allocation4 [shape = 'u8[1024]{0}', space=vmem, size = 0x400, scoped, tag = 'output window, operand 1, single buffered']
    #allocation5 [shape = 's32[1]{0}', space=sflag, size = 0x4, scoped, tag = 'scoped memory for lstm_layer_pallas.1']
    #allocation6 [shape = 'u8[1024]{0}', space=vmem, size = 0x400, scoped, tag = 'output window, operand 2, single buffered']
    #allocation7 [shape = 's32[1]{0}', space=sflag, size = 0x4, scoped, tag = 'scoped memory for lstm_layer_pallas.1']
    %12 = vsyncpa [#allocation5], 0
    %13 = vsyncpa [#allocation7], 0
    // Predicated region
    $region2: #{lstm_layer_pallas.1} parent=1 // pred_check
      _
    $region3: #{lstm_layer_pallas.1} parent=1 // pred_check_branch
      %15 = sbr.rel (0) target = $region5
    $region4: #{lstm_layer_pallas.1} parent=1 // pred_region
      _
    $region5: #{lstm_layer_pallas.1} parent=1 // pred_fallthru
      _
    // Predicated region
    $region6: #{lstm_layer_pallas.1} parent=1 // pred_check
      _
    $region7: #{lstm_layer_pallas.1} parent=1 // pred_check_branch
      %17 = sbr.rel (0) target = $region9
    $region8: #{lstm_layer_pallas.1} parent=1 // pred_region
      _
    $region9: #{lstm_layer_pallas.1} parent=1 // pred_fallthru
      _
    // Predicated region
    $region10: #{lstm_layer_pallas.1} parent=1 // pred_check
      _
    $region11: #{lstm_layer_pallas.1} parent=1 // pred_check_branch
      %19 = sbr.rel (0) target = $region13
    $region12: #{lstm_layer_pallas.1} parent=1 // pred_region
      _
    $region13: #{lstm_layer_pallas.1} parent=1 // pred_fallthru
      _
    // Predicated region
    $region14: #{lstm_layer_pallas.1} parent=1 // pred_check
      _
    $region15: #{lstm_layer_pallas.1} parent=1 // pred_check_branch
      %21 = sbr.rel (0) target = $region17
    $region16: #{lstm_layer_pallas.1} parent=1 // pred_region
      _
    $region17: #{lstm_layer_pallas.1} parent=1 // pred_fallthru
      _
    %p22 = scmp.eq.s32.totalorder 0, 0
    // Predicated region
    $region18: #{lstm_layer_pallas.1} parent=1 // pred_check
      %p23 = pneg %p22
    $region19: #{lstm_layer_pallas.1} parent=1 // pred_check_branch
      %25 = sbr.rel (%p23) target = $region21
    $region20: #{lstm_layer_pallas.1} parent=1 // pred_region
      %v26 = vld [vmem:[%s2] sm:$0x3]
      %vm27 = vcmask 254976
      %28 = vst.msk [vmem:[#allocation2] sm:$0x3] %vm27, %v26
      %v29 = vld [vmem:[%s3] sm:$0x3]
      %30 = vst.msk [vmem:[#allocation3] sm:$0x3] %vm27, %v29
    $region21: #{lstm_layer_pallas.1} parent=1 // pred_fallthru
      _
    %v31 = vld [vmem:[%s1] sm:$0xff]
    %v32 = vld [vmem:[%s1 + $0x8] sm:$0xff]
    %v33 = vld [vmem:[%s1 + $0x10] sm:$0xff]
    %v34 = vld [vmem:[%s1 + $0x18] sm:$0xff]
    %v35 = vlaneseq
    %v36 = vand.u32 %v35, 127
    %vm37 = vcmp.ge.s32.totalorder %v36, 64
    %vm38 = vcmp.lt.s32.totalorder %v36, 96
    %vm39 = vmand %vm37, %vm38
    %v40 = vld [vmem:[#allocation2] sm:$0x3]
    %v41 = vld [vmem:[#allocation3] sm:$0x3]
    %v42 = vld [vmem:[%s0] sm:$0x3]
    %vm43 = vcmask 261120
    %v45 = vsel %vm43, %v40, 0
    %47 = vmatprep.subr.mxu0 0.0
    %48 = vmatpush1.msra.mxu0 %v31
    %49 = vmatprep.subr.mxu0 0.0
    %50 = vmatpush1.msra.mxu0 %v32
    %51 = vmatprep.subr.mxu0 0.0
    %52 = vmatpush1.msra.mxu0 %v33
    %53 = vmatprep.subr.mxu0 0.0
    %54 = vmatpush1.msra.mxu0 %v34
    %55 = vmatprep.subr.mxu0 0.0
    %56 = vmatpush1.msra.mxu0 0.0
    %57 = vmatprep.subr.mxu0 0.0
    %58 = vmatpush1.msra.mxu0 0.0
    %59 = vmatprep.subr.mxu0 0.0
    %60 = vmatpush1.msra.mxu0 0.0
    %61 = vmatprep.subr.mxu0 0.0
    %62 = vmatpush1.msra.mxu0 0.0
    %63 = vmatprep.subr.mxu0 0.0
    %64 = vmatpush1.msra.mxu0 0.0
    %65 = vmatprep.subr.mxu0 0.0
    %66 = vmatpush1.msra.mxu0 0.0
    %67 = vmatprep.subr.mxu0 0.0
    %68 = vmatpush1.msra.mxu0 0.0
    %69 = vmatprep.subr.mxu0 0.0
    %70 = vmatpush1.msra.mxu0 0.0
    %71 = vmatprep.subr.mxu0 0.0
    %72 = vmatpush1.msra.mxu0 0.0
    %73 = vmatprep.subr.mxu0 0.0
    %74 = vmatpush1.msra.mxu0 0.0
    %75 = vmatprep.subr.mxu0 0.0
    %76 = vmatpush1.msra.mxu0 0.0
    %77 = vmatprep.subr.mxu0 0.0
    %78 = vmatpush1.msra.mxu0 0.0
    %79 = vmatprep.subr.mxu0 0.0
    %80 = vmatpush1.msra.mxu0 0.0
    %81 = vmatprep.subr.mxu0 0.0
    %82 = vmatpush1.msra.mxu0 0.0
    %83 = vmatprep.subr.mxu0 0.0
    %84 = vmatpush1.msra.mxu0 0.0
    %85 = vmatprep.subr.mxu0 0.0
    %86 = vmatpush1.msra.mxu0 0.0
    %87 = vmatprep.subr.mxu0 0.0
    %88 = vmatpush1.msra.mxu0 0.0
    %89 = vmatprep.subr.mxu0 0.0
    %90 = vmatpush1.msra.mxu0 0.0
    %91 = vmatprep.subr.mxu0 0.0
    %92 = vmatpush1.msra.mxu0 0.0
    %93 = vmatprep.subr.mxu0 0.0
    %94 = vmatpush1.msra.mxu0 0.0
    %95 = vmatprep.subr.mxu0 0.0
    %96 = vmatpush1.msra.mxu0 0.0
    %97 = vmatprep.subr.mxu0 0.0
    %98 = vmatpush1.msra.mxu0 0.0
    %99 = vmatprep.subr.mxu0 0.0
    %100 = vmatpush1.msra.mxu0 0.0
    %101 = vmatprep.subr.mxu0 0.0
    %102 = vmatpush1.msra.mxu0 0.0
    %103 = vmatprep.subr.mxu0 0.0
    %104 = vmatpush1.msra.mxu0 0.0
    %105 = vmatprep.subr.mxu0 0.0
    %106 = vmatpush1.msra.mxu0 0.0
    %107 = vmatprep.subr.mxu0 0.0
    %108 = vmatpush1.msra.mxu0 0.0
    %109 = vmatprep.subr.mxu0 0.0
    %110 = vmatpush1.msra.mxu0 0.0
    %111 = vmatprep.mubr.f32.mxu0 0.0
    %112 = vmatmul.mubr.f32.gmra.mrb[0].mxu0 %v45
    %v113 = vpop.f32.mrb[0].mxu0
    %v114 = vadd.f32 0.0, %v113
    %v115 = vpop.f32.mrb[0].mxu0
    %116 = vdwg.mxu0
    %v117 = vadd.f32 %v42, %v114
    %v118 = vtanh.pop %v117
    %v119 = vxor.u32 %v117, 2147483648
    %v120 = vmul.f32 %v119, 1.442695
    %v121 = vpow.pop %v120
    %v122 = vadd.f32 %v121, 1.0
    %v123 = vrcp.pop %v122
    %v124 = vmul.f32 1.0, %v123
    %v125 = vsel %vm39, %v118, %v124
    %127 = vrot.lane.b32.xlu0 %v41, 32
    %v128 = vpop.permute.xlu0 %127
    %v130 = vmul.f32 %v125, %v128
    %132 = vrot.lane.b32.xlu0 %v125, 64
    %v133 = vpop.permute.xlu0 %132
    %v135 = vmul.f32 %v125, %v133
    %137 = vrot.lane.b32.xlu0 %v135, 32
    %v138 = vpop.permute.xlu0 %137
    %v140 = vadd.f32 %v130, %v138
    %v141 = vtanh.pop %v140
    %143 = vrot.lane.b32.xlu0 %v141, 64
    %v144 = vpop.permute.xlu0 %143
    %v146 = vmul.f32 %v125, %v144
    %148 = vrot.lane.b32.xlu0 %v146, 32
    %v149 = vpop.permute.xlu0 %148
    %vm151 = vcmask 254976
    %152 = vst.msk [vmem:[%s4] sm:$0x3] %vm151, %v149
    %s153 = scalar_lea.vmem %s0, 2
    %v154 = vld [vmem:[%s153] sm:$0x3]
    %v155 = vsel %vm43, %v149, 0
    %157 = vmatprep.subr.mxu0 0.0
    %158 = vmatpush1.msra.mxu0 %v31
    %159 = vmatprep.subr.mxu0 0.0
    %160 = vmatpush1.msra.mxu0 %v32
    %161 = vmatprep.subr.mxu0 0.0
    %162 = vmatpush1.msra.mxu0 %v33
    %163 = vmatprep.subr.mxu0 0.0
    %164 = vmatpush1.msra.mxu0 %v34
    %165 = vmatprep.subr.mxu0 0.0
    %166 = vmatpush1.msra.mxu0 0.0
    %167 = vmatprep.subr.mxu0 0.0
    %168 = vmatpush1.msra.mxu0 0.0
    %169 = vmatprep.subr.mxu0 0.0
    %170 = vmatpush1.msra.mxu0 0.0
    %171 = vmatprep.subr.mxu0 0.0
    %172 = vmatpush1.msra.mxu0 0.0
    %173 = vmatprep.subr.mxu0 0.0
    %174 = vmatpush1.msra.mxu0 0.0
    %175 = vmatprep.subr.mxu0 0.0
    %176 = vmatpush1.msra.mxu0 0.0
    %177 = vmatprep.subr.mxu0 0.0
    %178 = vmatpush1.msra.mxu0 0.0
    %179 = vmatprep.subr.mxu0 0.0
    %180 = vmatpush1.msra.mxu0 0.0
    %181 = vmatprep.subr.mxu0 0.0
    %182 = vmatpush1.msra.mxu0 0.0
    %183 = vmatprep.subr.mxu0 0.0
    %184 = vmatpush1.msra.mxu0 0.0
    %185 = vmatprep.subr.mxu0 0.0
    %186 = vmatpush1.msra.mxu0 0.0
    %187 = vmatprep.subr.mxu0 0.0
    %188 = vmatpush1.msra.mxu0 0.0
    %189 = vmatprep.subr.mxu0 0.0
    %190 = vmatpush1.msra.mxu0 0.0
    %191 = vmatprep.subr.mxu0 0.0
    %192 = vmatpush1.msra.mxu0 0.0
    %193 = vmatprep.subr.mxu0 0.0
    %194 = vmatpush1.msra.mxu0 0.0
    %195 = vmatprep.subr.mxu0 0.0
    %196 = vmatpush1.msra.mxu0 0.0
    %197 = vmatprep.subr.mxu0 0.0
    %198 = vmatpush1.msra.mxu0 0.0
    %199 = vmatprep.subr.mxu0 0.0
    %200 = vmatpush1.msra.mxu0 0.0
    %201 = vmatprep.subr.mxu0 0.0
    %202 = vmatpush1.msra.mxu0 0.0
    %203 = vmatprep.subr.mxu0 0.0
    %204 = vmatpush1.msra.mxu0 0.0
    %205 = vmatprep.subr.mxu0 0.0
    %206 = vmatpush1.msra.mxu0 0.0
    %207 = vmatprep.subr.mxu0 0.0
    %208 = vmatpush1.msra.mxu0 0.0
    %209 = vmatprep.subr.mxu0 0.0
    %210 = vmatpush1.msra.mxu0 0.0
    %211 = vmatprep.subr.mxu0 0.0
    %212 = vmatpush1.msra.mxu0 0.0
    %213 = vmatprep.subr.mxu0 0.0
    %214 = vmatpush1.msra.mxu0 0.0
    %215 = vmatprep.subr.mxu0 0.0
    %216 = vmatpush1.msra.mxu0 0.0
    %217 = vmatprep.subr.mxu0 0.0
    %218 = vmatpush1.msra.mxu0 0.0
    %219 = vmatprep.subr.mxu0 0.0
    %220 = vmatpush1.msra.mxu0 0.0
    %221 = vmatprep.mubr.f32.mxu0 0.0
    %222 = vmatmul.mubr.f32.gmra.mrb[0].mxu0 %v155
    %v223 = vpop.f32.mrb[0].mxu0
    %v224 = vadd.f32 0.0, %v223
    %v225 = vpop.f32.mrb[0].mxu0
    %226 = vdwg.mxu0
    %v227 = vadd.f32 %v154, %v224
    %v228 = vtanh.pop %v227
    %v229 = vxor.u32 %v227, 2147483648
    %v230 = vmul.f32 %v229, 1.442695
    %v231 = vpow.pop %v230
    %v232 = vadd.f32 %v231, 1.0
    %v233 = vrcp.pop %v232
    %v234 = vmul.f32 1.0, %v233
    %v235 = vsel %vm39, %v228, %v234
    %v236 = vmul.f32 %v235, %v140
    %238 = vrot.lane.b32.xlu0 %v235, 64
    %v239 = vpop.permute.xlu0 %238
    %v241 = vmul.f32 %v235, %v239
    %243 = vrot.lane.b32.xlu0 %v241, 32
    %v244 = vpop.permute.xlu0 %243
    %v246 = vadd.f32 %v236, %v244
    %v247 = vtanh.pop %v246
    %249 = vrot.lane.b32.xlu0 %v247, 64
    %v250 = vpop.permute.xlu0 %249
    %v252 = vmul.f32 %v235, %v250
    %254 = vrot.lane.b32.xlu0 %v252, 32
    %v255 = vpop.permute.xlu0 %254
    %s257 = scalar_lea.vmem %s4, 2
    %258 = vst.msk [vmem:[%s257] sm:$0x3] %vm151, %v255
    %s259 = scalar_lea.vmem %s0, 4
    %v260 = vld [vmem:[%s259] sm:$0x3]
    %v261 = vsel %vm43, %v255, 0
    %263 = vmatprep.subr.mxu0 0.0
    %264 = vmatpush1.msra.mxu0 %v31
    %265 = vmatprep.subr.mxu0 0.0
    %266 = vmatpush1.msra.mxu0 %v32
    %267 = vmatprep.subr.mxu0 0.0
    %268 = vmatpush1.msra.mxu0 %v33
    %269 = vmatprep.subr.mxu0 0.0
    %270 = vmatpush1.msra.mxu0 %v34
    %271 = vmatprep.subr.mxu0 0.0
    %272 = vmatpush1.msra.mxu0 0.0
    %273 = vmatprep.subr.mxu0 0.0
    %274 = vmatpush1.msra.mxu0 0.0
    %275 = vmatprep.subr.mxu0 0.0
    %276 = vmatpush1.msra.mxu0 0.0
    %277 = vmatprep.subr.mxu0 0.0
    %278 = vmatpush1.msra.mxu0 0.0
    %279 = vmatprep.subr.mxu0 0.0
    %280 = vmatpush1.msra.mxu0 0.0
    %281 = vmatprep.subr.mxu0 0.0
    %282 = vmatpush1.msra.mxu0 0.0
    %283 = vmatprep.subr.mxu0 0.0
    %284 = vmatpush1.msra.mxu0 0.0
    %285 = vmatprep.subr.mxu0 0.0
    %286 = vmatpush1.msra.mxu0 0.0
    %287 = vmatprep.subr.mxu0 0.0
    %288 = vmatpush1.msra.mxu0 0.0
    %289 = vmatprep.subr.mxu0 0.0
    %290 = vmatpush1.msra.mxu0 0.0
    %291 = vmatprep.subr.mxu0 0.0
    %292 = vmatpush1.msra.mxu0 0.0
    %293 = vmatprep.subr.mxu0 0.0
    %294 = vmatpush1.msra.mxu0 0.0
    %295 = vmatprep.subr.mxu0 0.0
    %296 = vmatpush1.msra.mxu0 0.0
    %297 = vmatprep.subr.mxu0 0.0
    %298 = vmatpush1.msra.mxu0 0.0
    %299 = vmatprep.subr.mxu0 0.0
    %300 = vmatpush1.msra.mxu0 0.0
    %301 = vmatprep.subr.mxu0 0.0
    %302 = vmatpush1.msra.mxu0 0.0
    %303 = vmatprep.subr.mxu0 0.0
    %304 = vmatpush1.msra.mxu0 0.0
    %305 = vmatprep.subr.mxu0 0.0
    %306 = vmatpush1.msra.mxu0 0.0
    %307 = vmatprep.subr.mxu0 0.0
    %308 = vmatpush1.msra.mxu0 0.0
    %309 = vmatprep.subr.mxu0 0.0
    %310 = vmatpush1.msra.mxu0 0.0
    %311 = vmatprep.subr.mxu0 0.0
    %312 = vmatpush1.msra.mxu0 0.0
    %313 = vmatprep.subr.mxu0 0.0
    %314 = vmatpush1.msra.mxu0 0.0
    %315 = vmatprep.subr.mxu0 0.0
    %316 = vmatpush1.msra.mxu0 0.0
    %317 = vmatprep.subr.mxu0 0.0
    %318 = vmatpush1.msra.mxu0 0.0
    %319 = vmatprep.subr.mxu0 0.0
    %320 = vmatpush1.msra.mxu0 0.0
    %321 = vmatprep.subr.mxu0 0.0
    %322 = vmatpush1.msra.mxu0 0.0
    %323 = vmatprep.subr.mxu0 0.0
    %324 = vmatpush1.msra.mxu0 0.0
    %325 = vmatprep.subr.mxu0 0.0
    %326 = vmatpush1.msra.mxu0 0.0
    %327 = vmatprep.mubr.f32.mxu0 0.0
    %328 = vmatmul.mubr.f32.gmra.mrb[0].mxu0 %v261
    %v329 = vpop.f32.mrb[0].mxu0
    %v330 = vadd.f32 0.0, %v329
    %v331 = vpop.f32.mrb[0].mxu0
    %332 = vdwg.mxu0
    %v333 = vadd.f32 %v260, %v330
    %v334 = vtanh.pop %v333
    %v335 = vxor.u32 %v333, 2147483648
    %v336 = vmul.f32 %v335, 1.442695
    %v337 = vpow.pop %v336
    %v338 = vadd.f32 %v337, 1.0
    %v339 = vrcp.pop %v338
    %v340 = vmul.f32 1.0, %v339
    %v341 = vsel %vm39, %v334, %v340
    %v342 = vmul.f32 %v341, %v246
    %344 = vrot.lane.b32.xlu0 %v341, 64
    %v345 = vpop.permute.xlu0 %344
    %v347 = vmul.f32 %v341, %v345
    %349 = vrot.lane.b32.xlu0 %v347, 32
    %v350 = vpop.permute.xlu0 %349
    %v352 = vadd.f32 %v342, %v350
    %v353 = vtanh.pop %v352
    %355 = vrot.lane.b32.xlu0 %v353, 64
    %v356 = vpop.permute.xlu0 %355
    %v358 = vmul.f32 %v341, %v356
    %360 = vrot.lane.b32.xlu0 %v358, 32
    %v361 = vpop.permute.xlu0 %360
    %s363 = scalar_lea.vmem %s4, 4
    %364 = vst.msk [vmem:[%s363] sm:$0x3] %vm151, %v361
    %s365 = scalar_lea.vmem %s0, 6
    %v366 = vld [vmem:[%s365] sm:$0x3]
    %v367 = vsel %vm43, %v361, 0
    %369 = vmatprep.subr.mxu0 0.0
    %370 = vmatpush1.msra.mxu0 %v31
    %371 = vmatprep.subr.mxu0 0.0
    %372 = vmatpush1.msra.mxu0 %v32
    %373 = vmatprep.subr.mxu0 0.0
    %374 = vmatpush1.msra.mxu0 %v33
    %375 = vmatprep.subr.mxu0 0.0
    %376 = vmatpush1.msra.mxu0 %v34
    %377 = vmatprep.subr.mxu0 0.0
    %378 = vmatpush1.msra.mxu0 0.0
    %379 = vmatprep.subr.mxu0 0.0
    %380 = vmatpush1.msra.mxu0 0.0
    %381 = vmatprep.subr.mxu0 0.0
    %382 = vmatpush1.msra.mxu0 0.0
    %383 = vmatprep.subr.mxu0 0.0
    %384 = vmatpush1.msra.mxu0 0.0
    %385 = vmatprep.subr.mxu0 0.0
    %386 = vmatpush1.msra.mxu0 0.0
    %387 = vmatprep.subr.mxu0 0.0
    %388 = vmatpush1.msra.mxu0 0.0
    %389 = vmatprep.subr.mxu0 0.0
    %390 = vmatpush1.msra.mxu0 0.0
    %391 = vmatprep.subr.mxu0 0.0
    %392 = vmatpush1.msra.mxu0 0.0
    %393 = vmatprep.subr.mxu0 0.0
    %394 = vmatpush1.msra.mxu0 0.0
    %395 = vmatprep.subr.mxu0 0.0
    %396 = vmatpush1.msra.mxu0 0.0
    %397 = vmatprep.subr.mxu0 0.0
    %398 = vmatpush1.msra.mxu0 0.0
    %399 = vmatprep.subr.mxu0 0.0
    %400 = vmatpush1.msra.mxu0 0.0
    %401 = vmatprep.subr.mxu0 0.0
    %402 = vmatpush1.msra.mxu0 0.0
    %403 = vmatprep.subr.mxu0 0.0
    %404 = vmatpush1.msra.mxu0 0.0
    %405 = vmatprep.subr.mxu0 0.0
    %406 = vmatpush1.msra.mxu0 0.0
    %407 = vmatprep.subr.mxu0 0.0
    %408 = vmatpush1.msra.mxu0 0.0
    %409 = vmatprep.subr.mxu0 0.0
    %410 = vmatpush1.msra.mxu0 0.0
    %411 = vmatprep.subr.mxu0 0.0
    %412 = vmatpush1.msra.mxu0 0.0
    %413 = vmatprep.subr.mxu0 0.0
    %414 = vmatpush1.msra.mxu0 0.0
    %415 = vmatprep.subr.mxu0 0.0
    %416 = vmatpush1.msra.mxu0 0.0
    %417 = vmatprep.subr.mxu0 0.0
    %418 = vmatpush1.msra.mxu0 0.0
    %419 = vmatprep.subr.mxu0 0.0
    %420 = vmatpush1.msra.mxu0 0.0
    %421 = vmatprep.subr.mxu0 0.0
    %422 = vmatpush1.msra.mxu0 0.0
    %423 = vmatprep.subr.mxu0 0.0
    %424 = vmatpush1.msra.mxu0 0.0
    %425 = vmatprep.subr.mxu0 0.0
    %426 = vmatpush1.msra.mxu0 0.0
    %427 = vmatprep.subr.mxu0 0.0
    %428 = vmatpush1.msra.mxu0 0.0
    %429 = vmatprep.subr.mxu0 0.0
    %430 = vmatpush1.msra.mxu0 0.0
    %431 = vmatprep.subr.mxu0 0.0
    %432 = vmatpush1.msra.mxu0 0.0
    %433 = vmatprep.mubr.f32.mxu0 0.0
    %434 = vmatmul.mubr.f32.gmra.mrb[0].mxu0 %v367
    %v435 = vpop.f32.mrb[0].mxu0
    %v436 = vadd.f32 0.0, %v435
    %v437 = vpop.f32.mrb[0].mxu0
    %438 = vdwg.mxu0
    %v439 = vadd.f32 %v366, %v436
    %v440 = vtanh.pop %v439
    %v441 = vxor.u32 %v439, 2147483648
    %v442 = vmul.f32 %v441, 1.442695
    %v443 = vpow.pop %v442
    %v444 = vadd.f32 %v443, 1.0
    %v445 = vrcp.pop %v444
    %v446 = vmul.f32 1.0, %v445
    %v447 = vsel %vm39, %v440, %v446
    %v448 = vmul.f32 %v447, %v352
    %450 = vrot.lane.b32.xlu0 %v447, 64
    %v451 = vpop.permute.xlu0 %450
    %v453 = vmul.f32 %v447, %v451
    %455 = vrot.lane.b32.xlu0 %v453, 32
    %v456 = vpop.permute.xlu0 %455
    %v458 = vadd.f32 %v448, %v456
    %v459 = vtanh.pop %v458
    %461 = vrot.lane.b32.xlu0 %v459, 64
    %v462 = vpop.permute.xlu0 %461
    %v464 = vmul.f32 %v447, %v462
    %466 = vrot.lane.b32.xlu0 %v464, 32
    %v467 = vpop.permute.xlu0 %466
    %s469 = scalar_lea.vmem %s4, 6
    %470 = vst.msk [vmem:[%s469] sm:$0x3] %vm151, %v467
    %s471 = scalar_lea.vmem %s0, 8
    %v472 = vld [vmem:[%s471] sm:$0x3]
    %v473 = vsel %vm43, %v467, 0
    %475 = vmatprep.subr.mxu0 0.0
    %476 = vmatpush1.msra.mxu0 %v31
    %477 = vmatprep.subr.mxu0 0.0
    %478 = vmatpush1.msra.mxu0 %v32
    %479 = vmatprep.subr.mxu0 0.0
    %480 = vmatpush1.msra.mxu0 %v33
    %481 = vmatprep.subr.mxu0 0.0
    %482 = vmatpush1.msra.mxu0 %v34
    %483 = vmatprep.subr.mxu0 0.0
    %484 = vmatpush1.msra.mxu0 0.0
    %485 = vmatprep.subr.mxu0 0.0
    %486 = vmatpush1.msra.mxu0 0.0
    %487 = vmatprep.subr.mxu0 0.0
    %488 = vmatpush1.msra.mxu0 0.0
    %489 = vmatprep.subr.mxu0 0.0
    %490 = vmatpush1.msra.mxu0 0.0
    %491 = vmatprep.subr.mxu0 0.0
    %492 = vmatpush1.msra.mxu0 0.0
    %493 = vmatprep.subr.mxu0 0.0
    %494 = vmatpush1.msra.mxu0 0.0
    %495 = vmatprep.subr.mxu0 0.0
    %496 = vmatpush1.msra.mxu0 0.0
    %497 = vmatprep.subr.mxu0 0.0
    %498 = vmatpush1.msra.mxu0 0.0
    %499 = vmatprep.subr.mxu0 0.0
    %500 = vmatpush1.msra.mxu0 0.0
    %501 = vmatprep.subr.mxu0 0.0
    %502 = vmatpush1.msra.mxu0 0.0
    %503 = vmatprep.subr.mxu0 0.0
    %504 = vmatpush1.msra.mxu0 0.0
    %505 = vmatprep.subr.mxu0 0.0
    %506 = vmatpush1.msra.mxu0 0.0
    %507 = vmatprep.subr.mxu0 0.0
    %508 = vmatpush1.msra.mxu0 0.0
    %509 = vmatprep.subr.mxu0 0.0
    %510 = vmatpush1.msra.mxu0 0.0
    %511 = vmatprep.subr.mxu0 0.0
    %512 = vmatpush1.msra.mxu0 0.0
    %513 = vmatprep.subr.mxu0 0.0
    %514 = vmatpush1.msra.mxu0 0.0
    %515 = vmatprep.subr.mxu0 0.0
    %516 = vmatpush1.msra.mxu0 0.0
    %517 = vmatprep.subr.mxu0 0.0
    %518 = vmatpush1.msra.mxu0 0.0
    %519 = vmatprep.subr.mxu0 0.0
    %520 = vmatpush1.msra.mxu0 0.0
    %521 = vmatprep.subr.mxu0 0.0
    %522 = vmatpush1.msra.mxu0 0.0
    %523 = vmatprep.subr.mxu0 0.0
    %524 = vmatpush1.msra.mxu0 0.0
    %525 = vmatprep.subr.mxu0 0.0
    %526 = vmatpush1.msra.mxu0 0.0
    %527 = vmatprep.subr.mxu0 0.0
    %528 = vmatpush1.msra.mxu0 0.0
    %529 = vmatprep.subr.mxu0 0.0
    %530 = vmatpush1.msra.mxu0 0.0
    %531 = vmatprep.subr.mxu0 0.0
    %532 = vmatpush1.msra.mxu0 0.0
    %533 = vmatprep.subr.mxu0 0.0
    %534 = vmatpush1.msra.mxu0 0.0
    %535 = vmatprep.subr.mxu0 0.0
    %536 = vmatpush1.msra.mxu0 0.0
    %537 = vmatprep.subr.mxu0 0.0
    %538 = vmatpush1.msra.mxu0 0.0
    %539 = vmatprep.mubr.f32.mxu0 0.0
    %540 = vmatmul.mubr.f32.gmra.mrb[0].mxu0 %v473
    %v541 = vpop.f32.mrb[0].mxu0
    %v542 = vadd.f32 0.0, %v541
    %v543 = vpop.f32.mrb[0].mxu0
    %544 = vdwg.mxu0
    %v545 = vadd.f32 %v472, %v542
    %v546 = vtanh.pop %v545
    %v547 = vxor.u32 %v545, 2147483648
    %v548 = vmul.f32 %v547, 1.442695
    %v549 = vpow.pop %v548
    %v550 = vadd.f32 %v549, 1.0
    %v551 = vrcp.pop %v550
    %v552 = vmul.f32 1.0, %v551
    %v553 = vsel %vm39, %v546, %v552
    %v554 = vmul.f32 %v553, %v458
    %556 = vrot.lane.b32.xlu0 %v553, 64
    %v557 = vpop.permute.xlu0 %556
    %v559 = vmul.f32 %v553, %v557
    %561 = vrot.lane.b32.xlu0 %v559, 32
    %v562 = vpop.permute.xlu0 %561
    %v564 = vadd.f32 %v554, %v562
    %v565 = vtanh.pop %v564
    %567 = vrot.lane.b32.xlu0 %v565, 64
    %v568 = vpop.permute.xlu0 %567
    %v570 = vmul.f32 %v553, %v568
    %572 = vrot.lane.b32.xlu0 %v570, 32
    %v573 = vpop.permute.xlu0 %572
    %s575 = scalar_lea.vmem %s4, 8
    %576 = vst.msk [vmem:[%s575] sm:$0x3] %vm151, %v573
    %s577 = scalar_lea.vmem %s0, 10
    %v578 = vld [vmem:[%s577] sm:$0x3]
    %v579 = vsel %vm43, %v573, 0
    %581 = vmatprep.subr.mxu0 0.0
    %582 = vmatpush1.msra.mxu0 %v31
    %583 = vmatprep.subr.mxu0 0.0
    %584 = vmatpush1.msra.mxu0 %v32
    %585 = vmatprep.subr.mxu0 0.0
    %586 = vmatpush1.msra.mxu0 %v33
    %587 = vmatprep.subr.mxu0 0.0
    %588 = vmatpush1.msra.mxu0 %v34
    %589 = vmatprep.subr.mxu0 0.0
    %590 = vmatpush1.msra.mxu0 0.0
    %591 = vmatprep.subr.mxu0 0.0
    %592 = vmatpush1.msra.mxu0 0.0
    %593 = vmatprep.subr.mxu0 0.0
    %594 = vmatpush1.msra.mxu0 0.0
    %595 = vmatprep.subr.mxu0 0.0
    %596 = vmatpush1.msra.mxu0 0.0
    %597 = vmatprep.subr.mxu0 0.0
    %598 = vmatpush1.msra.mxu0 0.0
    %599 = vmatprep.subr.mxu0 0.0
    %600 = vmatpush1.msra.mxu0 0.0
    %601 = vmatprep.subr.mxu0 0.0
    %602 = vmatpush1.msra.mxu0 0.0
    %603 = vmatprep.subr.mxu0 0.0
    %604 = vmatpush1.msra.mxu0 0.0
    %605 = vmatprep.subr.mxu0 0.0
    %606 = vmatpush1.msra.mxu0 0.0
    %607 = vmatprep.subr.mxu0 0.0
    %608 = vmatpush1.msra.mxu0 0.0
    %609 = vmatprep.subr.mxu0 0.0
    %610 = vmatpush1.msra.mxu0 0.0
    %611 = vmatprep.subr.mxu0 0.0
    %612 = vmatpush1.msra.mxu0 0.0
    %613 = vmatprep.subr.mxu0 0.0
    %614 = vmatpush1.msra.mxu0 0.0
    %615 = vmatprep.subr.mxu0 0.0
    %616 = vmatpush1.msra.mxu0 0.0
    %617 = vmatprep.subr.mxu0 0.0
    %618 = vmatpush1.msra.mxu0 0.0
    %619 = vmatprep.subr.mxu0 0.0
    %620 = vmatpush1.msra.mxu0 0.0
    %621 = vmatprep.subr.mxu0 0.0
    %622 = vmatpush1.msra.mxu0 0.0
    %623 = vmatprep.subr.mxu0 0.0
    %624 = vmatpush1.msra.mxu0 0.0
    %625 = vmatprep.subr.mxu0 0.0
    %626 = vmatpush1.msra.mxu0 0.0
    %627 = vmatprep.subr.mxu0 0.0
    %628 = vmatpush1.msra.mxu0 0.0
    %629 = vmatprep.subr.mxu0 0.0
    %630 = vmatpush1.msra.mxu0 0.0
    %631 = vmatprep.subr.mxu0 0.0
    %632 = vmatpush1.msra.mxu0 0.0
    %633 = vmatprep.subr.mxu0 0.0
    %634 = vmatpush1.msra.mxu0 0.0
    %635 = vmatprep.subr.mxu0 0.0
    %636 = vmatpush1.msra.mxu0 0.0
    %637 = vmatprep.subr.mxu0 0.0
    %638 = vmatpush1.msra.mxu0 0.0
    %639 = vmatprep.subr.mxu0 0.0
    %640 = vmatpush1.msra.mxu0 0.0
    %641 = vmatprep.subr.mxu0 0.0
    %642 = vmatpush1.msra.mxu0 0.0
    %643 = vmatprep.subr.mxu0 0.0
    %644 = vmatpush1.msra.mxu0 0.0
    %645 = vmatprep.mubr.f32.mxu0 0.0
    %646 = vmatmul.mubr.f32.gmra.mrb[0].mxu0 %v579
    %v647 = vpop.f32.mrb[0].mxu0
    %v648 = vadd.f32 0.0, %v647
    %v649 = vpop.f32.mrb[0].mxu0
    %650 = vdwg.mxu0
    %v651 = vadd.f32 %v578, %v648
    %v652 = vtanh.pop %v651
    %v653 = vxor.u32 %v651, 2147483648
    %v654 = vmul.f32 %v653, 1.442695
    %v655 = vpow.pop %v654
    %v656 = vadd.f32 %v655, 1.0
    %v657 = vrcp.pop %v656
    %v658 = vmul.f32 1.0, %v657
    %v659 = vsel %vm39, %v652, %v658
    %v660 = vmul.f32 %v659, %v564
    %662 = vrot.lane.b32.xlu0 %v659, 64
    %v663 = vpop.permute.xlu0 %662
    %v665 = vmul.f32 %v659, %v663
    %667 = vrot.lane.b32.xlu0 %v665, 32
    %v668 = vpop.permute.xlu0 %667
    %v670 = vadd.f32 %v660, %v668
    %v671 = vtanh.pop %v670
    %673 = vrot.lane.b32.xlu0 %v671, 64
    %v674 = vpop.permute.xlu0 %673
    %v676 = vmul.f32 %v659, %v674
    %678 = vrot.lane.b32.xlu0 %v676, 32
    %v679 = vpop.permute.xlu0 %678
    %s681 = scalar_lea.vmem %s4, 10
    %682 = vst.msk [vmem:[%s681] sm:$0x3] %vm151, %v679
    %s683 = scalar_lea.vmem %s0, 12
    %v684 = vld [vmem:[%s683] sm:$0x3]
    %v685 = vsel %vm43, %v679, 0
    %687 = vmatprep.subr.mxu0 0.0
    %688 = vmatpush1.msra.mxu0 %v31
    %689 = vmatprep.subr.mxu0 0.0
    %690 = vmatpush1.msra.mxu0 %v32
    %691 = vmatprep.subr.mxu0 0.0
    %692 = vmatpush1.msra.mxu0 %v33
    %693 = vmatprep.subr.mxu0 0.0
    %694 = vmatpush1.msra.mxu0 %v34
    %695 = vmatprep.subr.mxu0 0.0
    %696 = vmatpush1.msra.mxu0 0.0
    %697 = vmatprep.subr.mxu0 0.0
    %698 = vmatpush1.msra.mxu0 0.0
    %699 = vmatprep.subr.mxu0 0.0
    %700 = vmatpush1.msra.mxu0 0.0
    %701 = vmatprep.subr.mxu0 0.0
    %702 = vmatpush1.msra.mxu0 0.0
    %703 = vmatprep.subr.mxu0 0.0
    %704 = vmatpush1.msra.mxu0 0.0
    %705 = vmatprep.subr.mxu0 0.0
    %706 = vmatpush1.msra.mxu0 0.0
    %707 = vmatprep.subr.mxu0 0.0
    %708 = vmatpush1.msra.mxu0 0.0
    %709 = vmatprep.subr.mxu0 0.0
    %710 = vmatpush1.msra.mxu0 0.0
    %711 = vmatprep.subr.mxu0 0.0
    %712 = vmatpush1.msra.mxu0 0.0
    %713 = vmatprep.subr.mxu0 0.0
    %714 = vmatpush1.msra.mxu0 0.0
    %715 = vmatprep.subr.mxu0 0.0
    %716 = vmatpush1.msra.mxu0 0.0
    %717 = vmatprep.subr.mxu0 0.0
    %718 = vmatpush1.msra.mxu0 0.0
    %719 = vmatprep.subr.mxu0 0.0
    %720 = vmatpush1.msra.mxu0 0.0
    %721 = vmatprep.subr.mxu0 0.0
    %722 = vmatpush1.msra.mxu0 0.0
    %723 = vmatprep.subr.mxu0 0.0
    %724 = vmatpush1.msra.mxu0 0.0
    %725 = vmatprep.subr.mxu0 0.0
    %726 = vmatpush1.msra.mxu0 0.0
    %727 = vmatprep.subr.mxu0 0.0
    %728 = vmatpush1.msra.mxu0 0.0
    %729 = vmatprep.subr.mxu0 0.0
    %730 = vmatpush1.msra.mxu0 0.0
    %731 = vmatprep.subr.mxu0 0.0
    %732 = vmatpush1.msra.mxu0 0.0
    %733 = vmatprep.subr.mxu0 0.0
    %734 = vmatpush1.msra.mxu0 0.0
    %735 = vmatprep.subr.mxu0 0.0
    %736 = vmatpush1.msra.mxu0 0.0
    %737 = vmatprep.subr.mxu0 0.0
    %738 = vmatpush1.msra.mxu0 0.0
    %739 = vmatprep.subr.mxu0 0.0
    %740 = vmatpush1.msra.mxu0 0.0
    %741 = vmatprep.subr.mxu0 0.0
    %742 = vmatpush1.msra.mxu0 0.0
    %743 = vmatprep.subr.mxu0 0.0
    %744 = vmatpush1.msra.mxu0 0.0
    %745 = vmatprep.subr.mxu0 0.0
    %746 = vmatpush1.msra.mxu0 0.0
    %747 = vmatprep.subr.mxu0 0.0
    %748 = vmatpush1.msra.mxu0 0.0
    %749 = vmatprep.subr.mxu0 0.0
    %750 = vmatpush1.msra.mxu0 0.0
    %751 = vmatprep.mubr.f32.mxu0 0.0
    %752 = vmatmul.mubr.f32.gmra.mrb[0].mxu0 %v685
    %v753 = vpop.f32.mrb[0].mxu0
    %v754 = vadd.f32 0.0, %v753
    %v755 = vpop.f32.mrb[0].mxu0
    %756 = vdwg.mxu0
    %v757 = vadd.f32 %v684, %v754
    %v758 = vtanh.pop %v757
    %v759 = vxor.u32 %v757, 2147483648
    %v760 = vmul.f32 %v759, 1.442695
    %v761 = vpow.pop %v760
    %v762 = vadd.f32 %v761, 1.0
    %v763 = vrcp.pop %v762
    %v764 = vmul.f32 1.0, %v763
    %v765 = vsel %vm39, %v758, %v764
    %v766 = vmul.f32 %v765, %v670
    %768 = vrot.lane.b32.xlu0 %v765, 64
    %v769 = vpop.permute.xlu0 %768
    %v771 = vmul.f32 %v765, %v769
    %773 = vrot.lane.b32.xlu0 %v771, 32
    %v774 = vpop.permute.xlu0 %773
    %v776 = vadd.f32 %v766, %v774
    %v777 = vtanh.pop %v776
    %779 = vrot.lane.b32.xlu0 %v777, 64
    %v780 = vpop.permute.xlu0 %779
    %v782 = vmul.f32 %v765, %v780
    %784 = vrot.lane.b32.xlu0 %v782, 32
    %v785 = vpop.permute.xlu0 %784
    %s787 = scalar_lea.vmem %s4, 12
    %788 = vst.msk [vmem:[%s787] sm:$0x3] %vm151, %v785
    %s789 = scalar_lea.vmem %s0, 14
    %v790 = vld [vmem:[%s789] sm:$0x3]
    %v791 = vsel %vm43, %v785, 0
    %793 = vmatprep.subr.mxu0 0.0
    %794 = vmatpush1.msra.mxu0 %v31
    %795 = vmatprep.subr.mxu0 0.0
    %796 = vmatpush1.msra.mxu0 %v32
    %797 = vmatprep.subr.mxu0 0.0
    %798 = vmatpush1.msra.mxu0 %v33
    %799 = vmatprep.subr.mxu0 0.0
    %800 = vmatpush1.msra.mxu0 %v34
    %801 = vmatprep.subr.mxu0 0.0
    %802 = vmatpush1.msra.mxu0 0.0
    %803 = vmatprep.subr.mxu0 0.0
    %804 = vmatpush1.msra.mxu0 0.0
    %805 = vmatprep.subr.mxu0 0.0
    %806 = vmatpush1.msra.mxu0 0.0
    %807 = vmatprep.subr.mxu0 0.0
    %808 = vmatpush1.msra.mxu0 0.0
    %809 = vmatprep.subr.mxu0 0.0
    %810 = vmatpush1.msra.mxu0 0.0
    %811 = vmatprep.subr.mxu0 0.0
    %812 = vmatpush1.msra.mxu0 0.0
    %813 = vmatprep.subr.mxu0 0.0
    %814 = vmatpush1.msra.mxu0 0.0
    %815 = vmatprep.subr.mxu0 0.0
    %816 = vmatpush1.msra.mxu0 0.0
    %817 = vmatprep.subr.mxu0 0.0
    %818 = vmatpush1.msra.mxu0 0.0
    %819 = vmatprep.subr.mxu0 0.0
    %820 = vmatpush1.msra.mxu0 0.0
    %821 = vmatprep.subr.mxu0 0.0
    %822 = vmatpush1.msra.mxu0 0.0
    %823 = vmatprep.subr.mxu0 0.0
    %824 = vmatpush1.msra.mxu0 0.0
    %825 = vmatprep.subr.mxu0 0.0
    %826 = vmatpush1.msra.mxu0 0.0
    %827 = vmatprep.subr.mxu0 0.0
    %828 = vmatpush1.msra.mxu0 0.0
    %829 = vmatprep.subr.mxu0 0.0
    %830 = vmatpush1.msra.mxu0 0.0
    %831 = vmatprep.subr.mxu0 0.0
    %832 = vmatpush1.msra.mxu0 0.0
    %833 = vmatprep.subr.mxu0 0.0
    %834 = vmatpush1.msra.mxu0 0.0
    %835 = vmatprep.subr.mxu0 0.0
    %836 = vmatpush1.msra.mxu0 0.0
    %837 = vmatprep.subr.mxu0 0.0
    %838 = vmatpush1.msra.mxu0 0.0
    %839 = vmatprep.subr.mxu0 0.0
    %840 = vmatpush1.msra.mxu0 0.0
    %841 = vmatprep.subr.mxu0 0.0
    %842 = vmatpush1.msra.mxu0 0.0
    %843 = vmatprep.subr.mxu0 0.0
    %844 = vmatpush1.msra.mxu0 0.0
    %845 = vmatprep.subr.mxu0 0.0
    %846 = vmatpush1.msra.mxu0 0.0
    %847 = vmatprep.subr.mxu0 0.0
    %848 = vmatpush1.msra.mxu0 0.0
    %849 = vmatprep.subr.mxu0 0.0
    %850 = vmatpush1.msra.mxu0 0.0
    %851 = vmatprep.subr.mxu0 0.0
    %852 = vmatpush1.msra.mxu0 0.0
    %853 = vmatprep.subr.mxu0 0.0
    %854 = vmatpush1.msra.mxu0 0.0
    %855 = vmatprep.subr.mxu0 0.0
    %856 = vmatpush1.msra.mxu0 0.0
    %857 = vmatprep.mubr.f32.mxu0 0.0
    %858 = vmatmul.mubr.f32.gmra.mrb[0].mxu0 %v791
    %v859 = vpop.f32.mrb[0].mxu0
    %v860 = vadd.f32 0.0, %v859
    %v861 = vpop.f32.mrb[0].mxu0
    %862 = vdwg.mxu0
    %v863 = vadd.f32 %v790, %v860
    %v864 = vtanh.pop %v863
    %v865 = vxor.u32 %v863, 2147483648
    %v866 = vmul.f32 %v865, 1.442695
    %v867 = vpow.pop %v866
    %v868 = vadd.f32 %v867, 1.0
    %v869 = vrcp.pop %v868
    %v870 = vmul.f32 1.0, %v869
    %v871 = vsel %vm39, %v864, %v870
    %v872 = vmul.f32 %v871, %v776
    %874 = vrot.lane.b32.xlu0 %v871, 64
    %v875 = vpop.permute.xlu0 %874
    %v877 = vmul.f32 %v871, %v875
    %879 = vrot.lane.b32.xlu0 %v877, 32
    %v880 = vpop.permute.xlu0 %879
    %v882 = vadd.f32 %v872, %v880
    %v883 = vtanh.pop %v882
    %885 = vrot.lane.b32.xlu0 %v883, 64
    %v886 = vpop.permute.xlu0 %885
    %v888 = vmul.f32 %v871, %v886
    %890 = vrot.lane.b32.xlu0 %v888, 32
    %v891 = vpop.permute.xlu0 %890
    %s893 = scalar_lea.vmem %s4, 14
    %894 = vst.msk [vmem:[%s893] sm:$0x3] %vm151, %v891
    %895 = vst.msk [vmem:[#allocation2] sm:$0x3] %vm151, %v891
    %897 = vrot.lane.b32.xlu0 %v882, 96
    %v898 = vpop.permute.xlu0 %897
    %900 = vst.msk [vmem:[#allocation3] sm:$0x3] %vm151, %v898
    // Predicated region
    $region22: #{lstm_layer_pallas.1} parent=1 // pred_check
      %p901 = pneg %p22
    $region23: #{lstm_layer_pallas.1} parent=1 // pred_check_branch
      %903 = sbr.rel (%p901) target = $region25
    $region24: #{lstm_layer_pallas.1} parent=1 // pred_region
      %904 = vst.msk [vmem:[#allocation4] sm:$0x3] %vm151, %v891
      %905 = vst.msk [vmem:[#allocation6] sm:$0x3] %vm151, %v898
    $region25: #{lstm_layer_pallas.1} parent=1 // pred_fallthru
      _
    // Predicated region
    $region26: #{lstm_layer_pallas.1} parent=1 // pred_check
      _
    $region27: #{lstm_layer_pallas.1} parent=1 // pred_check_branch
      %907 = sbr.rel (0) target = $region29
    $region28: #{lstm_layer_pallas.1} parent=1 // pred_region
      _
    $region29: #{lstm_layer_pallas.1} parent=1 // pred_fallthru
      _
    // Predicated region
    $region30: #{lstm_layer_pallas.1} parent=1 // pred_check
      _
    $region31: #{lstm_layer_pallas.1} parent=1 // pred_check_branch
      %909 = sbr.rel (0) target = $region33
    $region32: #{lstm_layer_pallas.1} parent=1 // pred_region
      %s911 = ssub.s32 32, 32
      %912 = vsyncadd [#allocation5], %s911
      %s914 = sshll.u32 [#allocation4], 4
      %s915 = int_to_ptr.vmem [resolvable:$true] %s914
      %917 = dma.vmem_to_hbm [thread:$0]  %s915, 32, %s5, [#allocation5]
    $region33: #{lstm_layer_pallas.1} parent=1 // pred_fallthru
      _
    // Predicated region
    $region34: #{lstm_layer_pallas.1} parent=1 // pred_check
      _
    $region35: #{lstm_layer_pallas.1} parent=1 // pred_check_branch
      %919 = sbr.rel (0) target = $region37
    $region36: #{lstm_layer_pallas.1} parent=1 // pred_region
      %s921 = ssub.s32 32, 32
      %922 = vsyncadd [#allocation7], %s921
      %s924 = sshll.u32 [#allocation6], 4
      %s925 = int_to_ptr.vmem [resolvable:$true] %s924
      %927 = dma.vmem_to_hbm [thread:$0]  %s925, 32, %s6, [#allocation7]
    $region37: #{lstm_layer_pallas.1} parent=1 // pred_fallthru
      _
    // Predicated region
    $region38: #{lstm_layer_pallas.1} parent=1 // pred_check
      _
    $region39: #{lstm_layer_pallas.1} parent=1 // pred_check_branch
      %929 = sbr.rel (0) target = $region41
    $region40: #{lstm_layer_pallas.1} parent=1 // pred_region
      _
    $region41: #{lstm_layer_pallas.1} parent=1 // pred_fallthru
      _
    // Predicated region
    $region42: #{lstm_layer_pallas.1} parent=1 // pred_check
      _
    $region43: #{lstm_layer_pallas.1} parent=1 // pred_check_branch
      %931 = sbr.rel (0) target = $region45
    $region44: #{lstm_layer_pallas.1} parent=1 // pred_region
      %932 = dma.done [#allocation5], 32
    $region45: #{lstm_layer_pallas.1} parent=1 // pred_fallthru
      _
    // Predicated region
    $region46: #{lstm_layer_pallas.1} parent=1 // pred_check
      _
    $region47: #{lstm_layer_pallas.1} parent=1 // pred_check_branch
      %934 = sbr.rel (0) target = $region49
    $region48: #{lstm_layer_pallas.1} parent=1 // pred_region
      %935 = dma.done [#allocation7], 32
    $region49: #{lstm_layer_pallas.1} parent=1 // pred_fallthru
      _
    %936 = vsyncpa [#allocation5], 1
    %937 = vsyncpa [#allocation7], 1

</llo_original>
